<compile_context>
chip_gen: v5e
topology: v5e:2x2
jax: 0.10.0
libtpu: 0.0.40
codegen_flags: <defaults>
</compile_context>

<pallas_src>
import jax
import jax.numpy as jnp
from jax.experimental import pallas as pl
from jax.experimental.pallas import tpu as pltpu


def _svd_head_kernel(scores_ref, aux_ref, out_ref):
    # Block shapes: scores (Bb, N, N) in its incoming dtype (f32 or bf16);
    # aux (Bb, 8, N) f32 packed as [src*m_eff (3) | m_eff (1) | tgt*cnt_eff (3) | ones (1)];
    # out (Bb, 3, 4) f32 packed as [H (3x3) | mean_src (3x1)].
    aux = aux_ref[...]                              # (Bb, 8, N) f32
    src_m = aux[:, 0:3, :]                          # src * m_eff
    m_eff = aux[:, 3:4, :]                          # effective valid mask
    w_aug = aux[:, 4:8, :]                          # tgt * cnt_eff, last row = ones

    # Masked mean of src over its (valid / all) columns.
    nv_eff = jnp.sum(m_eff, axis=-1, keepdims=True)              # (Bb, 1, 1)
    mean_src = jnp.sum(src_m, axis=-1, keepdims=True) / nv_eff   # (Bb, 3, 1)
    src_c = src_m - mean_src * m_eff                             # (Bb, 3, N)

    # Softmax numerator only (normalization deferred to the (N, 4) result).
    # Row-max in the native dtype; upcast fused into the exp; MXU fed bf16.
    s = scores_ref[...]
    s_max = jnp.max(s, axis=-1, keepdims=True)
    e = jnp.exp((s - s_max).astype(jnp.float32)).astype(jnp.bfloat16)   # (Bb, N, N)

    # MXU: (Bb, N, N) x (Bb, 4, N) -> (Bb, N, 4); N streams through the M dim.
    # Column 3 (from the appended ones row) is the softmax denominator.
    t_aug = jnp.einsum('bak,bck->bac', e, w_aug.astype(jnp.bfloat16),
                       preferred_element_type=jnp.float32)       # (Bb, N, 4)
    t_corr = t_aug[..., 0:3] / t_aug[..., 3:4]                   # (Bb, N, 3)

    # H = src_c @ t_corr. The reference's "- mean_corr" term is exactly zero
    # because sum_n src_c[:, n] = 0 by construction of mean_src.
    h = jnp.einsum('bcn,bnd->bcd', src_c, t_corr,
                   preferred_element_type=jnp.float32)           # (Bb, 3, 3)

    out_ref[...] = jnp.concatenate([h, mean_src], axis=-1)       # (Bb, 3, 4)


def _vmem_budget_and_limit():
    """Generation-aware VMEM budget for block sizing + Mosaic scoped limit."""
    cap = None
    try:
        cap = getattr(pltpu.get_tpu_info(), "vmem_capacity_bytes", None)
    except Exception:
        cap = None
    if cap is not None and cap >= 100 * 1024 * 1024:    # v5e / v6e: 128 MiB physical
        return 48 * 1024 * 1024, 96 * 1024 * 1024
    # v7x (64 MiB per TensorCore) or unknown: stay conservative.
    return 20 * 1024 * 1024, 48 * 1024 * 1024


def _choose_block_b(B, N, scores_itemsize, budget_bytes):
    """Batch elements per grid step, bounded by the VMEM budget."""
    # Double-buffered scores DMA tile + ~10 B/elem of in-kernel temporaries
    # (f32 exp + bf16 MXU operand) + the packed (8, N) aux rows.
    per_b = N * N * (2 * scores_itemsize + 10) + 2 * 8 * N * 4 + 4096
    bb_vmem = max(1, budget_bytes // max(per_b, 1))
    # Keep >= 4 grid steps when the batch allows it: 2 TensorCores on v7x each
    # get >= 2 steps so the scores DMA pipelines against compute.
    if B >= 4:
        min_steps = 4
    elif B >= 2:
        min_steps = 2
    else:
        min_steps = 1
    bb_steps = max(1, B // min_steps)
    return int(max(1, min(B, bb_vmem, bb_steps)))


def svd_head_forward(src, tgt, scores, indices0, indices1, *, block_b=None):
    """Pallas-backed equivalent of SVDHead.forward. Returns (R, t).

    `scores` may be passed in bf16 (recommended on v5e, where the kernel is
    closest to HBM-bound); softmax math and accumulation stay f32 inside.
    """
    B, C, N = src.shape
    assert C == 3
    del indices1  # dead code in the reference module: never affects outputs

    f32 = jnp.float32
    src = src.astype(f32)
    tgt = tgt.astype(f32)

    # matches == 256 -> -1 ; valid = matches > -1.
    # (Faithful to the reference: if N > 256, index 256 is still the sentinel.)
    matches = jnp.where(indices0 == 256, -1, indices0).astype(jnp.int32)
    valid = matches > -1
    mask = valid.astype(f32)                                      # (B, N)
    nv = jnp.sum(mask, axis=-1, keepdims=True)                    # (B, 1)

    # cnt[b, k] = #{ j : valid[b, j] and matches[b, j] == k }: a broadcast
    # compare-and-sum (XLA-fusable) instead of a serialized TPU scatter-add.
    iota = jnp.arange(N, dtype=jnp.int32)
    hits = (matches[:, :, None] == iota[None, None, :]) & valid[:, :, None]
    cnt = jnp.sum(hits.astype(f32), axis=1)                       # (B, N)

    # Unified valid(nv > 3) / fallback(nv <= 3) path via cheap per-batch selects.
    use_valid = nv > 3.0
    cnt_eff = jnp.where(use_valid, cnt, 1.0)                      # (B, N)
    m_eff = jnp.where(use_valid, mask, 1.0)                       # (B, N)

    # Pack the small per-point operands into one (B, 8, N) f32 tensor:
    #   rows 0..2: src * m_eff     row 3: m_eff
    #   rows 4..6: tgt * cnt_eff   row 7: ones (softmax-denominator MXU column)
    aux = jnp.concatenate([
        src * m_eff[:, None, :],
        m_eff[:, None, :],
        tgt * cnt_eff[:, None, :],
        jnp.ones((B, 1, N), f32),
    ], axis=1)                                                    # (B, 8, N)

    budget, vmem_limit = _vmem_budget_and_limit()
    if block_b is None:
        block_b = _choose_block_b(B, N, scores.dtype.itemsize, budget)
    grid_b = pl.cdiv(B, block_b)

    # Ragged batch: pad (each batch element is independent) instead of
    # shrinking block_b to divide B exactly. Padded batches get m_eff = 1 and
    # ones-row = 1 so they stay numerically benign; their outputs are sliced off.
    b_pad = grid_b * block_b
    if b_pad != B:
        pad = b_pad - B
        scores = jnp.pad(scores, ((0, pad), (0, 0), (0, 0)))
        pad_aux = jnp.zeros((pad, 8, N), f32)
        pad_aux = pad_aux.at[:, 3, :].set(1.0).at[:, 7, :].set(1.0)
        aux = jnp.concatenate([aux, pad_aux], axis=0)

    # TODO(synk): for very large N (scores tile > the per-step VMEM budget even
    # at block_b=1, e.g. N >~ 1.5k f32 on v7x) add a trailing "arbitrary" grid
    # axis over scores rows and accumulate the unnormalized (rows, 4) matmul
    # output / H partials in VMEM scratch with pl.when init/finalize.
    hm = pl.pallas_call(
        _svd_head_kernel,
        out_shape=jax.ShapeDtypeStruct((b_pad, 3, 4), jnp.float32),
        grid_spec=pltpu.PrefetchScalarGridSpec(
            num_scalar_prefetch=0,
            grid=(grid_b,),
            in_specs=[
                pl.BlockSpec((block_b, N, N), lambda b: (b, 0, 0)),   # scores
                pl.BlockSpec((block_b, 8, N), lambda b: (b, 0, 0)),   # packed aux
            ],
            out_specs=pl.BlockSpec((block_b, 3, 4), lambda b: (b, 0, 0)),
        ),
        compiler_params=pltpu.CompilerParams(
            dimension_semantics=("parallel",),
            vmem_limit_bytes=vmem_limit),
    )(scores, aux)

    hm = hm[:B]
    h = hm[..., 0:3]                                              # (B, 3, 3)
    mean_src = hm[..., 3:4]                                       # (B, 3, 1)

    # TODO(synk): 3x3 SVD / determinant have no Pallas TPU equivalent; done in
    # plain JAX (the PyTorch module runs this in float64 — float32 here since
    # TPU has no native f64).
    u, s_vals, vh = jnp.linalg.svd(h)                # h = u @ diag(s) @ vh
    del s_vals
    v = jnp.swapaxes(vh, -1, -2)                     # torch.svd returns V, not V^T
    ut = jnp.swapaxes(u, -1, -2)
    r = jnp.matmul(v, ut)
    det = jnp.linalg.det(r)
    reflect = jnp.diag(jnp.array([1.0, 1.0, -1.0], dtype=h.dtype))   # self.reflect
    v_fixed = jnp.where(det[:, None, None] < 0.0, jnp.matmul(v, reflect), v)
    r = jnp.matmul(v_fixed, ut)

    # NOTE: reproduces the reference module's bug: the `+ src_corr_i.mean(...)`
    # line is a stand-alone (no-op) statement, so t = -R @ mean(src_i) only.
    t = -jnp.matmul(r, mean_src)                     # (B, 3, 1)
    return r, t.reshape(B, 3)


if __name__ == "__main__":
    key = jax.random.PRNGKey(0)
    B, N = 2, 16
    k1, k2, k3, k4 = jax.random.split(key, 4)

    src = jax.random.normal(k1, (B, 3, N), dtype=jnp.float32)
    tgt = jax.random.normal(k2, (B, 3, N), dtype=jnp.float32)
    scores = jax.random.normal(k3, (B, N, N), dtype=jnp.float32)

    base_idx = jax.random.randint(k4, (B, N), 0, N, dtype=jnp.int32)
    row = jnp.arange(N)
    # batch 0: mostly valid matches (a few marked 256 = "no match") -> nv > 3 path
    b0 = jnp.where(row % 5 == 0, 256, base_idx[0])
    # batch 1: only 2 valid matches -> exercises the nv <= 3 fallback path
    b1 = jnp.where(row < 2, base_idx[1], -1)
    indices0 = jnp.stack([b0, b1]).astype(jnp.int32)
    indices1 = jnp.full((B, N), 256, dtype=jnp.int32)   # unused by the outputs

    R, t = svd_head_forward(src, tgt, scores, indices0, indices1)
    R = jax.block_until_ready(R)
    t = jax.block_until_ready(t)

    assert R.shape == (B, 3, 3) and t.shape == (B, 3)
    assert bool(jnp.all(jnp.isfinite(R))) and bool(jnp.all(jnp.isfinite(t)))
    # R comes from an SVD -> must be (numerically) orthogonal.
    eye_err = jnp.max(jnp.abs(jnp.matmul(R, jnp.swapaxes(R, -1, -2))
                              - jnp.eye(3, dtype=R.dtype)))
    assert float(eye_err) < 1e-2
    print("KERNEL_OK")
</pallas_src>

<mosaic_0001>
module attributes {stable_mosaic.version = 11 : i64} {
  func.func @_svd_head_kernel(%arg0: i32, %arg1: memref<1x16x16xf32, #tpu.memory_space<vmem>>, %arg2: memref<1x8x16xf32, #tpu.memory_space<vmem>>, %arg3: memref<1x3x4xf32, #tpu.memory_space<vmem>>) attributes {dimension_semantics = [#tpu.dimension_semantics<parallel>], iteration_bounds = array<i64: 2>, scalar_prefetch = 0 : i64, scratch_operands = 0 : i64, tpu.core_type = #tpu.core_type<tc>, window_params = [{transform_indices = @transform_0, window_bounds = array<i64: 1, 16, 16>}, {transform_indices = @transform_1, window_bounds = array<i64: 1, 8, 16>}, {transform_indices = @transform_2, window_bounds = array<i64: 1, 3, 4>}]} {
    %c0 = arith.constant 0 : index
    %c0_0 = arith.constant 0 : index
    %c0_1 = arith.constant 0 : index
    %0 = vector.load %arg2[%c0, %c0_0, %c0_1] : memref<1x8x16xf32, #tpu.memory_space<vmem>>, vector<1x8x16xf32>
    %1 = vector.extract_strided_slice %0 {offsets = [0, 0, 0], sizes = [1, 3, 16], strides = [1, 1, 1]} : vector<1x8x16xf32> to vector<1x3x16xf32>
    %2 = vector.extract_strided_slice %0 {offsets = [0, 3, 0], sizes = [1, 1, 16], strides = [1, 1, 1]} : vector<1x8x16xf32> to vector<1x1x16xf32>
    %3 = vector.extract_strided_slice %0 {offsets = [0, 4, 0], sizes = [1, 4, 16], strides = [1, 1, 1]} : vector<1x8x16xf32> to vector<1x4x16xf32>
    %cst = arith.constant dense<0.000000e+00> : vector<1x1xf32>
    %4 = vector.multi_reduction <add>, %2, %cst [2] : vector<1x1x16xf32> to vector<1x1xf32>
    %5 = vector.shape_cast %4 : vector<1x1xf32> to vector<1x1x1xf32>
    %cst_2 = arith.constant dense<0.000000e+00> : vector<1x3xf32>
    %6 = vector.multi_reduction <add>, %1, %cst_2 [2] : vector<1x3x16xf32> to vector<1x3xf32>
    %7 = vector.shape_cast %6 : vector<1x3xf32> to vector<1x3x1xf32>
    %8 = vector.broadcast %5 : vector<1x1x1xf32> to vector<1x3x1xf32>
    %9 = arith.divf %7, %8 : vector<1x3x1xf32>
    %10 = vector.broadcast %9 : vector<1x3x1xf32> to vector<1x3x16xf32>
    %11 = vector.broadcast %2 : vector<1x1x16xf32> to vector<1x3x16xf32>
    %12 = arith.mulf %10, %11 : vector<1x3x16xf32>
    %13 = arith.subf %1, %12 : vector<1x3x16xf32>
    %c0_3 = arith.constant 0 : index
    %c0_4 = arith.constant 0 : index
    %c0_5 = arith.constant 0 : index
    %14 = vector.load %arg1[%c0_3, %c0_4, %c0_5] : memref<1x16x16xf32, #tpu.memory_space<vmem>>, vector<1x16x16xf32>
    %cst_6 = arith.constant dense<0xFF800000> : vector<1x16xf32>
    %15 = vector.multi_reduction <maximumf>, %14, %cst_6 [2] : vector<1x16x16xf32> to vector<1x16xf32>
    %16 = vector.shape_cast %15 : vector<1x16xf32> to vector<1x16x1xf32>
    %17 = vector.broadcast %16 : vector<1x16x1xf32> to vector<1x16x16xf32>
    %18 = arith.subf %14, %17 : vector<1x16x16xf32>
    %19 = math.exp %18 : vector<1x16x16xf32>
    %20 = arith.truncf %19 : vector<1x16x16xf32> to vector<1x16x16xbf16>
    %21 = arith.truncf %3 : vector<1x4x16xf32> to vector<1x4x16xbf16>
    "tpu.trace_start"() <{level = 10 : i32, message = "bak,bck->bac"}> : () -> ()
    %cst_7 = arith.constant dense<0.000000e+00> : vector<1x16x4xf32>
    %22 = tpu.matmul %20, %21, %cst_7 {dimension_numbers = #tpu.dot_dimension_numbers<[2], [2], [1], [1], [0, 0, 0, 1, 1, 1], [0], [0]>} : vector<1x16x16xbf16>, vector<1x4x16xbf16>, vector<1x16x4xf32> -> vector<1x16x4xf32>
    "tpu.trace_stop"() : () -> ()
    %23 = vector.extract_strided_slice %22 {offsets = [0, 0, 0], sizes = [1, 16, 3], strides = [1, 1, 1]} : vector<1x16x4xf32> to vector<1x16x3xf32>
    %24 = vector.extract_strided_slice %22 {offsets = [0, 0, 3], sizes = [1, 16, 1], strides = [1, 1, 1]} : vector<1x16x4xf32> to vector<1x16x1xf32>
    %25 = vector.broadcast %24 : vector<1x16x1xf32> to vector<1x16x3xf32>
    %26 = arith.divf %23, %25 : vector<1x16x3xf32>
    "tpu.trace_start"() <{level = 10 : i32, message = "bcn,bnd->bcd"}> : () -> ()
    %cst_8 = arith.constant dense<0.000000e+00> : vector<1x3x3xf32>
    %27 = tpu.matmul %13, %26, %cst_8 {dimension_numbers = #tpu.dot_dimension_numbers<[2], [1], [1], [2], [0, 0, 0, 1, 1, 2], [0], [0]>} : vector<1x3x16xf32>, vector<1x16x3xf32>, vector<1x3x3xf32> -> vector<1x3x3xf32>
    "tpu.trace_stop"() : () -> ()
    %28 = tpu.concatenate %27, %9 in 2 : vector<1x3x3xf32>, vector<1x3x1xf32> -> vector<1x3x4xf32>
    %c0_9 = arith.constant 0 : index
    %c0_10 = arith.constant 0 : index
    %c0_11 = arith.constant 0 : index
    %29 = vector.load %arg3[%c0_9, %c0_10, %c0_11] : memref<1x3x4xf32, #tpu.memory_space<vmem>>, vector<1x3x4xf32>
    tpu.vector_store %arg3[%c0_9, %c0_10, %c0_11], %28 {strides = array<i32>} : memref<1x3x4xf32, #tpu.memory_space<vmem>>, vector<1x3x4xf32>,
    return
  }
  func.func @transform_0(%arg0: i32) -> (i32, i32, i32) {
    %c0_i32 = arith.constant 0 : i32
    %c0_i32_0 = arith.constant 0 : i32
    %c0_i32_1 = arith.constant 0 : i32
    return %arg0, %c0_i32, %c0_i32_0 : i32, i32, i32
  }
  func.func @transform_1(%arg0: i32) -> (i32, i32, i32) {
    %c0_i32 = arith.constant 0 : i32
    %c0_i32_0 = arith.constant 0 : i32
    %c0_i32_1 = arith.constant 0 : i32
    return %arg0, %c0_i32, %c0_i32_0 : i32, i32, i32
  }
  func.func @transform_2(%arg0: i32) -> (i32, i32, i32) {
    %c0_i32 = arith.constant 0 : i32
    %c0_i32_0 = arith.constant 0 : i32
    %c0_i32_1 = arith.constant 0 : i32
    return %arg0, %c0_i32, %c0_i32_0 : i32, i32, i32
  }
}

</mosaic_0001>

<llo_original>
// kernel: tpu_custom_call.1
$region0: #{tpu_custom_call.1}
  #allocation0 [shape = 'u32[]', space=smem, size = 0x4, offset = 0x4, fixed_abs, tag = 'smem constant byte address 0x4 - core index']
  #allocation1 [shape = 'u32[72,128]{1,0:T(1,128)}', space=vmem, size = 0x9000, scoped, tag = 'internal scratch']
  %s0 = inlined_call_operand.hbm [shape: f32[2,16,16], index: 0, kind: input, shape index: {}]
  %s1 = inlined_call_operand.hbm [shape: f32[2,8,16], index: 1, kind: input, shape index: {}]
  %s2 = inlined_call_operand.vmem [shape: f32[2,3,4], index: 2, kind: output, shape index: {}]
  %s3 = sld [smem:[#allocation0]]
  $region49: #{tpu_custom_call.1} parent=0
    _
  %s5 = ssub.s32 1, %s3
  %s6 = scalar_select 0, %s5, %s3
  $region1: #{tpu_custom_call.1} parent=0
    #allocation2 [shape = 'u8[16384]{0}', space=vmem, size = 0x4000, scoped, tag = 'input window, operand 0']
    #allocation3 [shape = 's32[2]{0}', space=sflag, size = 0x8, scoped, tag = 'scoped memory for tpu_custom_call.1']
    #allocation4 [shape = 'u8[8192]{0}', space=vmem, size = 0x2000, scoped, tag = 'input window, operand 1']
    #allocation5 [shape = 's32[2]{0}', space=sflag, size = 0x8, scoped, tag = 'scoped memory for tpu_custom_call.1']
    %7 = vsyncpa [#allocation3], 0
    %s8 = scalar_lea.sflag [#allocation3], 1
    %9 = vsyncpa %s8, 0
    %10 = vsyncpa [#allocation5], 0
    %s11 = scalar_lea.sflag [#allocation5], 1
    %12 = vsyncpa %s11, 0
    loop: start=0, step=1, limit=4
    $region2: #{tpu_custom_call.1} parent=1 // loop_pre_header
      _
    $region3: #{tpu_custom_call.1} parent=1 // loop_header
      %s14 = sphi 0, %s18
      %p15 = scmp.ge.s32.totalorder %s14, 4
      %s24 = sphi 0, %s26
      %s27 = sphi 0, %s24
      %s28 = sphi 0, %s27
      %s44 = sphi 0, %s28
      %s50 = sphi 0, %s52
      %s53 = sphi 0, %s50
      %s54 = sphi 0, %s53
      %s70 = sphi 0, %s54
      %s76 = sphi 0, %s78
      %s79 = sphi 0, %s76
      %s80 = sphi 0, %s79
      %s96 = sphi 0, %s80
    $region4: #{tpu_custom_call.1} parent=1 // loop_header_branch
      %17 = sbr.rel (%p15) target = $region8
    $region5: #{tpu_custom_call.1} parent=1 // loop_body
      %s19 = ssub.s32 %s14, 1
      %s20 = ssub.s32 %s14, 2
      %s21 = sadd.s32 %s14, 1
      %s22 = ssub.s32 %s14, %s21
      %p23 = scmp.eq.s32.totalorder %s22, 0
      %s25 = sadd.s32 %s24, 1
      %s26 = scalar_select %p23, %s24, %s25
      %p29 = pneg %p23
      %p30 = scmp.eq.s32.totalorder %s14, 1
      %p31 = por %p29, %p30
      %p32 = scmp.ne.s32.totalorder %s24, %s27
      %p33 = scmp.eq.s32.totalorder %s14, 0
      %p34 = por %p32, %p33
      %p35 = scmp.ne.s32.totalorder %s24, %s27
      %p36 = scmp.eq.s32.totalorder %s19, 1
      %p37 = por %p35, %p36
      %p38 = scmp.ne.s32.totalorder %s27, %s28
      %p39 = scmp.eq.s32.totalorder %s19, 0
      %p40 = por %p38, %p39
      %p41 = scmp.ne.s32.totalorder %s27, %s28
      %p42 = scmp.eq.s32.totalorder %s20, 1
      %p43 = por %p41, %p42
      %p45 = scmp.ne.s32.totalorder %s28, %s44
      %p46 = scmp.eq.s32.totalorder %s20, 0
      %p47 = por %p45, %p46
      %s48 = ssub.s32 %s14, %s21
      %p49 = scmp.eq.s32.totalorder %s48, 0
      %s51 = sadd.s32 %s50, 1
      %s52 = scalar_select %p49, %s50, %s51
      %p55 = pneg %p49
      %p56 = scmp.eq.s32.totalorder %s14, 1
      %p57 = por %p55, %p56
      %p58 = scmp.ne.s32.totalorder %s50, %s53
      %p59 = scmp.eq.s32.totalorder %s14, 0
      %p60 = por %p58, %p59
      %p61 = scmp.ne.s32.totalorder %s50, %s53
      %p62 = scmp.eq.s32.totalorder %s19, 1
      %p63 = por %p61, %p62
      %p64 = scmp.ne.s32.totalorder %s53, %s54
      %p65 = scmp.eq.s32.totalorder %s19, 0
      %p66 = por %p64, %p65
      %p67 = scmp.ne.s32.totalorder %s53, %s54
      %p68 = scmp.eq.s32.totalorder %s20, 1
      %p69 = por %p67, %p68
      %p71 = scmp.ne.s32.totalorder %s54, %s70
      %p72 = scmp.eq.s32.totalorder %s20, 0
      %p73 = por %p71, %p72
      %s74 = ssub.s32 %s14, %s21
      %p75 = scmp.eq.s32.totalorder %s74, 0
      %s77 = sadd.s32 %s76, 1
      %s78 = scalar_select %p75, %s76, %s77
      %p81 = pneg %p75
      %p82 = scmp.eq.s32.totalorder %s14, 1
      %p83 = por %p81, %p82
      %p84 = scmp.ne.s32.totalorder %s76, %s79
      %p85 = scmp.eq.s32.totalorder %s14, 0
      %p86 = por %p84, %p85
      %p87 = scmp.ne.s32.totalorder %s76, %s79
      %p88 = scmp.eq.s32.totalorder %s19, 1
      %p89 = por %p87, %p88
      %p90 = scmp.ne.s32.totalorder %s79, %s80
      %p91 = scmp.eq.s32.totalorder %s19, 0
      %p92 = por %p90, %p91
      %p93 = scmp.ne.s32.totalorder %s79, %s80
      %p94 = scmp.eq.s32.totalorder %s20, 1
      %p95 = por %p93, %p94
      %p97 = scmp.ne.s32.totalorder %s80, %s96
      %p98 = scmp.eq.s32.totalorder %s20, 0
      %p99 = por %p97, %p98
      %p100 = scmp.le.s32.totalorder 1, %s14
      %p101 = scmp.lt.s32.totalorder %s14, 3
      %p102 = pnand %p100, %p101
      %p103 = pneg %p102
      // Predicated region
      $region9: #{tpu_custom_call.1} parent=5 // pred_check
        _
      $region10: #{tpu_custom_call.1} parent=5 // pred_check_branch
        %105 = sbr.rel (%p102) target = $region12
      $region11: #{tpu_custom_call.1} parent=5 // pred_region
        %s106 = ssub.s32 %s14, 1
      $region12: #{tpu_custom_call.1} parent=5 // pred_fallthru
        _
      %p107 = scmp.lt.s32.totalorder %s14, 2
      // Predicated region
      $region13: #{tpu_custom_call.1} parent=5 // pred_check
        %p108 = pneg %p107
      $region14: #{tpu_custom_call.1} parent=5 // pred_check_branch
        %110 = sbr.rel (%p108) target = $region16
      $region15: #{tpu_custom_call.1} parent=5 // pred_region
        // Predicated region
        $region17: #{tpu_custom_call.1} parent=15 // pred_check
          %p111 = pneg %p34
        $region18: #{tpu_custom_call.1} parent=15 // pred_check_branch
          %113 = sbr.rel (%p111) target = $region20
        $region19: #{tpu_custom_call.1} parent=15 // pred_region
          %s114 = sand.u32 %s24, 1
          %s115 = scalar_lea.sflag [#allocation3], %s114
          %s116 = sand.u32 %s24, 1
          %s117 = smul.addr %s116, 16
          %s118 = scalar_lea.vmem [#allocation2], %s117
          %120 = vsyncadd %s115, 0
          %s121 = smul.addr %s14, 2
          %s122 = smul.addr %s121, 8
          %s123 = scalar_lea.hbm %s0, %s122
          %s124 = sshll.u32 %s123, 4
          %s125 = int_to_ptr.hbm [resolvable:$true] %s124
          %s126 = sshll.u32 %s118, 4
          %s127 = int_to_ptr.vmem [resolvable:$true] %s126
          %132 = dma.hbm_to_vmem [thread:$0]  %s125, 256, %s127, %s115, 128, 128, 8
        $region20: #{tpu_custom_call.1} parent=15 // pred_fallthru
          _
        // Predicated region
        $region21: #{tpu_custom_call.1} parent=15 // pred_check
          %p133 = pneg %p60
        $region22: #{tpu_custom_call.1} parent=15 // pred_check_branch
          %135 = sbr.rel (%p133) target = $region24
        $region23: #{tpu_custom_call.1} parent=15 // pred_region
          %s136 = sand.u32 %s50, 1
          %s137 = scalar_lea.sflag [#allocation5], %s136
          %s138 = sand.u32 %s50, 1
          %s139 = smul.addr %s138, 8
          %s140 = scalar_lea.vmem [#allocation4], %s139
          %142 = vsyncadd %s137, 0
          %s143 = smul.addr %s14, 8
          %s144 = scalar_lea.hbm %s1, %s143
          %s146 = sshll.u32 %s144, 4
          %s147 = int_to_ptr.hbm [resolvable:$true] %s146
          %s148 = sshll.u32 %s140, 4
          %s149 = int_to_ptr.vmem [resolvable:$true] %s148
          %151 = dma.hbm_to_vmem [thread:$0]  %s147, 128, %s149, %s137
        $region24: #{tpu_custom_call.1} parent=15 // pred_fallthru
          _
      $region16: #{tpu_custom_call.1} parent=5 // pred_fallthru
        _
      %p152 = scmp.le.s32.totalorder 1, %s14
      %p153 = scmp.lt.s32.totalorder %s14, 3
      %p154 = pnand %p152, %p153
      %p155 = pneg %p154
      // Predicated region
      $region25: #{tpu_custom_call.1} parent=5 // pred_check
        _
      $region26: #{tpu_custom_call.1} parent=5 // pred_check_branch
        %157 = sbr.rel (%p154) target = $region28
      $region27: #{tpu_custom_call.1} parent=5 // pred_region
        %s158 = ssub.s32 %s14, 1
        %s159 = sand.u32 %s27, 1
        %s160 = scalar_lea.sflag [#allocation3], %s159
        %s161 = sand.u32 %s27, 1
        %s162 = smul.addr %s161, 16
        %s163 = scalar_lea.vmem [#allocation2], %s162
        // Predicated region
        $region29: #{tpu_custom_call.1} parent=27 // pred_check
          %p164 = pneg %p40
        $region30: #{tpu_custom_call.1} parent=27 // pred_check_branch
          %166 = sbr.rel (%p164) target = $region32
        $region31: #{tpu_custom_call.1} parent=27 // pred_region
          %168 = dma.done %s160, 256
        $region32: #{tpu_custom_call.1} parent=27 // pred_fallthru
          _
        %s169 = sand.u32 %s53, 1
        %s170 = scalar_lea.sflag [#allocation5], %s169
        %s171 = sand.u32 %s53, 1
        %s172 = smul.addr %s171, 8
        %s173 = scalar_lea.vmem [#allocation4], %s172
        // Predicated region
        $region33: #{tpu_custom_call.1} parent=27 // pred_check
          %p174 = pneg %p66
        $region34: #{tpu_custom_call.1} parent=27 // pred_check_branch
          %176 = sbr.rel (%p174) target = $region36
        $region35: #{tpu_custom_call.1} parent=27 // pred_region
          %178 = dma.done %s170, 128
        $region36: #{tpu_custom_call.1} parent=27 // pred_fallthru
          _
        %s179 = sand.u32 %s27, 1
        %s180 = scalar_lea.sflag [#allocation3], %s179
        %s181 = sand.u32 %s27, 1
        %s182 = smul.addr %s181, 16
        %s183 = scalar_lea.vmem [#allocation2], %s182
        %p184 = pneg %p40
        %p185 = pneg %p37
        %s186 = sand.u32 %s53, 1
        %s187 = scalar_lea.sflag [#allocation5], %s186
        %s188 = sand.u32 %s53, 1
        %s189 = smul.addr %s188, 8
        %s190 = scalar_lea.vmem [#allocation4], %s189
        %p191 = pneg %p66
        %p192 = pneg %p63
        %p193 = pneg %p92
        %p194 = pneg %p89
        %p195 = scmp.lt.s32.totalorder %s19, 1
        %s196 = scalar_select %p195, %s19, 1
        %s197 = smul.addr %s196, 4
        %s198 = scalar_lea.vmem %s2, %s197
        %p199 = scmp.lt.s32.totalorder %s19, 1
        %s200 = scalar_select %p199, %s19, 1
        %s201 = smul.addr %s200, 4
        %s202 = scalar_lea.vmem %s2, %s201
        %v204 = vld [vmem:[%s173] sm:$0xff]
        %vm205 = vcmask 125955
        %v206 = vsel %vm205, %v204, 0.0
        %207 = vadd.xlane.f32.xlu0 %v206
        %v208 = vpop.xlane.xlu0 %207
        %vm209 = vcmask 124928
        %v210 = vsel %vm209, %v204, 0.0
        %211 = vadd.xlane.f32.xlu0 %v210
        %v212 = vpop.xlane.xlu0 %211
        %v213 = vperm.slane %v208, 3
        %v214 = vrcp.pop %v213
        %v215 = vmul.f32 %v213, %v214
        %v216 = vsub.f32 1.0, %v215
        %v217 = vmul.f32 %v214, %v216
        %v218 = vadd.f32 %v214, %v217
        %vm219 = vweird.f32 %v213
        %vm220 = vweird.f32 %v214
        %vm221 = vmor %vm219, %vm220
        %v222 = vsel %vm221, %v214, %v218
        %v223 = vand.u32 2147483647, %v213
        %vm224 = vcmp.eq.f32.partialorder %v223, 8.507059e+37
        %v225 = vand.u32 %v213, 2147483648
        %v226 = vor.u32 1.1754944e-38, %v225
        %v227 = vsel %vm224, %v226, %v222
        %v228 = vmul.f32 %v212, %v227
        %v229 = vperm.slane %v204, 3
        %v230 = vmul.f32 %v228, %v229
        %v231 = vsub.f32 %v204, %v230
        %v232 = vld [vmem:[%s163] sm:$0xff]
        %v233 = vld [vmem:[%s163 + $0x8] sm:$0xff]
        %vm234 = vcmask 130048
        %v235 = vsel %vm234, %v232, -inf
        %236 = vmax.xlane.f32.xlu0 %v235
        %v237 = vpop.xlane.xlu0 %236
        %v238 = vsel %vm234, %v233, -inf
        %239 = vmax.xlane.f32.xlu0 %v238
        %v240 = vpop.xlane.xlu0 %239
        %v241 = vsub.f32 %v232, %v237
        %v242 = vsub.f32 %v233, %v240
        %v243 = vmul.f32 %v241, 1.442695
        %v244 = vpow.pop %v243
        %v245 = vmul.f32 %v242, 1.442695
        %v246 = vpow.pop %v245
        %v247 = vpack.c.bf16 %v244, %v244
        %v248 = vpack.c.bf16 %v246, %v246
        %v249 = vpack.c.bf16 %v204, %v204
        %v252 = vunpack.c.l.b16 %v247
        %v253 = vunpack.c.l.b16 %v248
        %v254 = vpack.c.b16 %v253, %v252
        %v256 = vunpack.c.l.b16 %v249
        %v257 = vpack.c.b16 %v256, %v256
        %v258 = vrot.slane %v257, 2
        %v260 = vsel %vm234, %v254, 0
        %v263 = vsel %vm234, %v258, 0
        %265 = vmatpush.bf16.xpose.msra.mxu0 0
        %266 = vmatpush.bf16.xpose.msra.mxu0 0
        %267 = vmatpush.bf16.xpose.msra.mxu0 0
        %268 = vmatpush.bf16.xpose.msra.mxu0 0
        %269 = vmatpush.bf16.xpose.msra.mxu0 0
        %270 = vmatpush.bf16.xpose.msra.mxu0 0
        %271 = vmatpush.bf16.xpose.msra.mxu0 0
        %272 = vmatpush.bf16.xpose.msra.mxu0 %v263
        %273 = vmatmul.bf16.gmra.mxu0 %v260
        %v274 = vpop.f32.mrf.mxu0
        %v275 = vadd.f32 0.0, %v274
        %v276 = vpop.f32.mrf.mxu0
        %v277 = vadd.f32 0.0, %v276
        %278 = vdwg.mxu0
        %280 = vset.pattern.permute.xlu0 3
        %281 = vperm.xlu0 %280, %v275
        %v282 = vpop.permute.xlu0 %281
        %285 = vset.pattern.permute.xlu0 3
        %286 = vperm.xlu0 %285, %v277
        %v287 = vpop.permute.xlu0 %286
        %v289 = vrcp.pop %v282
        %v290 = vmul.f32 %v282, %v289
        %v291 = vsub.f32 1.0, %v290
        %v292 = vmul.f32 %v289, %v291
        %v293 = vadd.f32 %v289, %v292
        %vm294 = vweird.f32 %v282
        %vm295 = vweird.f32 %v289
        %vm296 = vmor %vm294, %vm295
        %v297 = vsel %vm296, %v289, %v293
        %v298 = vand.u32 2147483647, %v282
        %vm299 = vcmp.eq.f32.partialorder %v298, 8.507059e+37
        %v300 = vand.u32 %v282, 2147483648
        %v301 = vor.u32 1.1754944e-38, %v300
        %v302 = vsel %vm299, %v301, %v297
        %v303 = vmul.f32 %v275, %v302
        %v304 = vrcp.pop %v287
        %v305 = vmul.f32 %v287, %v304
        %v306 = vsub.f32 1.0, %v305
        %v307 = vmul.f32 %v304, %v306
        %v308 = vadd.f32 %v304, %v307
        %vm309 = vweird.f32 %v287
        %vm310 = vweird.f32 %v304
        %vm311 = vmor %vm309, %vm310
        %v312 = vsel %vm311, %v304, %v308
        %v313 = vand.u32 2147483647, %v287
        %vm314 = vcmp.eq.f32.partialorder %v313, 8.507059e+37
        %v315 = vand.u32 %v287, 2147483648
        %v316 = vor.u32 1.1754944e-38, %v315
        %v317 = vsel %vm314, %v316, %v312
        %v318 = vmul.f32 %v277, %v317
        %v320 = vsel %vm234, %v231, 0
        %322 = vmatpush.msra.mxu0 0.0
        %323 = vmatpush.msra.mxu0 0.0
        %324 = vmatpush.msra.mxu0 0.0
        %325 = vmatpush.msra.mxu0 0.0
        %326 = vmatpush.msra.mxu0 0.0
        %327 = vmatpush.msra.mxu0 0.0
        %328 = vmatpush.msra.mxu0 0.0
        %329 = vmatpush.msra.mxu0 0.0
        %330 = vmatpush.msra.mxu0 0.0
        %331 = vmatpush.msra.mxu0 0.0
        %332 = vmatpush.msra.mxu0 0.0
        %333 = vmatpush.msra.mxu0 0.0
        %334 = vmatpush.msra.mxu0 0.0
        %335 = vmatpush.msra.mxu0 0.0
        %336 = vmatpush.msra.mxu0 %v318
        %337 = vmatpush.msra.mxu0 %v303
        %338 = vmatmul.f32.gmra.mxu0 %v320
        %v339 = vpop.f32.mrf.mxu0
        %v340 = vadd.f32 0.0, %v339
        %341 = vdwg.mxu0
        %vm342 = vcmask 23552
        %v343 = vsel %vm342, %v340, %v228
        %vm344 = vcmask 26624
        %345 = vst.msk [vmem:[%s202] sm:$0x7] %vm344, %v343
        %p346 = scmp.lt.s32.totalorder %s19, 1
        %s347 = scalar_select %p346, %s19, 1
        %s348 = smul.addr %s347, 4
        %s349 = scalar_lea.vmem %s2, %s348
        // Predicated region
        $region37: #{tpu_custom_call.1} parent=27 // pred_check
          %p350 = pneg %p89
        $region38: #{tpu_custom_call.1} parent=27 // pred_check_branch
          %352 = sbr.rel (%p350) target = $region40
        $region39: #{tpu_custom_call.1} parent=27 // pred_region
          _
        $region40: #{tpu_custom_call.1} parent=27 // pred_fallthru
          _
      $region28: #{tpu_custom_call.1} parent=5 // pred_fallthru
        _
      %p353 = scmp.le.s32.totalorder 2, %s14
      // Predicated region
      $region41: #{tpu_custom_call.1} parent=5 // pred_check
        %p354 = pneg %p353
      $region42: #{tpu_custom_call.1} parent=5 // pred_check_branch
        %356 = sbr.rel (%p354) target = $region44
      $region43: #{tpu_custom_call.1} parent=5 // pred_region
        %s357 = ssub.s32 %s14, 2
        // Predicated region
        $region45: #{tpu_custom_call.1} parent=43 // pred_check
          %p358 = pneg %p95
        $region46: #{tpu_custom_call.1} parent=43 // pred_check_branch
          %360 = sbr.rel (%p358) target = $region48
        $region47: #{tpu_custom_call.1} parent=43 // pred_region
          %p361 = scmp.lt.s32.totalorder %s20, 1
          %s362 = scalar_select %p361, %s20, 1
          %s363 = smul.addr %s362, 4
          %s364 = scalar_lea.vmem %s2, %s363
        $region48: #{tpu_custom_call.1} parent=43 // pred_fallthru
          _
      $region44: #{tpu_custom_call.1} parent=5 // pred_fallthru
        _
    $region6: #{tpu_custom_call.1} parent=1 // loop_footer
      %s18 = sadd.s32 1, %s14
    $region7: #{tpu_custom_call.1} parent=1 // loop_footer_branch
      %13 = sbr.rel target = $region3
    $region8: #{tpu_custom_call.1} parent=1 // loop_exit
      _
    %365 = vsyncpa [#allocation3], 1
    %s366 = scalar_lea.sflag [#allocation3], 1
    %367 = vsyncpa %s366, 1
    %368 = vsyncpa [#allocation5], 1
    %s369 = scalar_lea.sflag [#allocation5], 1
    %370 = vsyncpa %s369, 1

</llo_original>
